<compile_context>
chip_gen: v5e
topology: v5e:2x2
jax: 0.10.0
libtpu: 0.0.40
codegen_flags: <defaults>
</compile_context>

<pallas_src>
import functools

import jax
import jax.numpy as jnp
from jax.experimental import pallas as pl
from jax.experimental.pallas import tpu as pltpu

LANES = 128  # lane-pad everything to one vreg width


def mmdl_kernel(x_ref, w_ref, b_ref, out_ref):
    """x_ref: (B,128)  w_ref: (4,128,128)  b_ref: (4,128)  out_ref: (2,B,128)."""
    f32 = jnp.float32
    x = x_ref[...]                                               # [x1 | x2 | 0]

    # Encoder layer 1 for BOTH modalities (block-diagonal weights).
    h = jnp.dot(x, w_ref[0], preferred_element_type=f32) + b_ref[0:1, :]
    h = jnp.maximum(h, 0.0)

    # Encoder layer 2 -> output arrives already concatenated: [o1 | o2 | 0].
    fused = jnp.dot(h, w_ref[1], preferred_element_type=f32) + b_ref[1:2, :]
    out_ref[0] = fused

    # Head: Linear -> ReLU -> Linear.
    hh = jnp.dot(fused, w_ref[2], preferred_element_type=f32) + b_ref[2:3, :]
    hh = jnp.maximum(hh, 0.0)
    head = jnp.dot(hh, w_ref[3], preferred_element_type=f32) + b_ref[3:4, :]
    out_ref[1] = head


@jax.jit
def mmdl_forward(x1, x2, params):
    (w1a, b1a, w1b, b1b, w2a, b2a, w2b, b2b, wha, bha, whb, bhb) = params
    f32 = jnp.float32

    B, D1 = x1.shape
    D2 = x2.shape[1]
    H1, H2 = w1a.shape[1], w2a.shape[1]
    O1, O2 = w1b.shape[1], w2b.shape[1]
    HH = wha.shape[1]
    C = whb.shape[1]
    assert D1 + D2 <= LANES and H1 + H2 <= LANES
    assert O1 + O2 <= LANES and HH <= LANES and C <= LANES

    # --- operand packing (trace-time layout plumbing, fused under jit) -----
    # Input slab: [x1 | x2 | zero-pad] -> (B, 128).
    x = jnp.zeros((B, LANES), f32)
    x = x.at[:, :D1].set(x1.astype(f32)).at[:, D1:D1 + D2].set(x2.astype(f32))

    # Weight slab: 4 lane/sublane-padded (128,128) matrices.
    #   [0] blockdiag(w1a, w2a)   [1] blockdiag(w1b, w2b)
    #   [2] wha                   [3] whb
    w = jnp.zeros((4, LANES, LANES), f32)
    w = w.at[0, :D1, :H1].set(w1a)
    w = w.at[0, D1:D1 + D2, H1:H1 + H2].set(w2a)
    w = w.at[1, :H1, :O1].set(w1b)
    w = w.at[1, H1:H1 + H2, O1:O1 + O2].set(w2b)
    w = w.at[2, :O1 + O2, :HH].set(wha)
    w = w.at[3, :HH, :C].set(whb)

    # Bias slab: one row per layer, zero-padded to 128 lanes.
    b = jnp.zeros((4, LANES), f32)
    b = b.at[0, :H1].set(b1a.reshape(-1)).at[0, H1:H1 + H2].set(b2a.reshape(-1))
    b = b.at[1, :O1].set(b1b.reshape(-1)).at[1, O1:O1 + O2].set(b2b.reshape(-1))
    b = b.at[2, :HH].set(bha.reshape(-1))
    b = b.at[3, :C].set(bhb.reshape(-1))

    vmem = pl.BlockSpec(memory_space=pltpu.MemorySpace.VMEM)
    out = pl.pallas_call(
        mmdl_kernel,
        out_shape=jax.ShapeDtypeStruct((2, B, LANES), f32),
        in_specs=[vmem, vmem, vmem],
        out_specs=vmem,
    )(x, w, b)

    fused = out[0]
    out1 = fused[:, :O1]
    out2 = fused[:, O1:O1 + O2]
    head = out[1, :, :C]
    return [out1, out2], head


def _ref_forward(x1, x2, params):
    (w1a, b1a, w1b, b1b, w2a, b2a, w2b, b2b, wha, bha, whb, bhb) = params
    o1 = jnp.maximum(x1 @ w1a + b1a, 0.0) @ w1b + b1b
    o2 = jnp.maximum(x2 @ w2a + b2a, 0.0) @ w2b + b2b
    fused = jnp.concatenate([o1, o2], axis=-1)
    head = jnp.maximum(fused @ wha + bha, 0.0) @ whb + bhb
    return [o1, o2], head


if __name__ == "__main__":
    # Small, MMDL-consistent shapes: batch=8, modality dims 16 / 32,
    # encoder hidden 32, encoder output 32 (per modality), head hidden 64,
    # 16 output classes.
    B, D1, D2 = 8, 16, 32
    H_ENC, OUT_ENC = 32, 32
    H_HEAD, N_CLS = 64, 16

    key = jax.random.PRNGKey(0)
    keys = jax.random.split(key, 16)

    x1 = jax.random.normal(keys[0], (B, D1), dtype=jnp.float32)
    x2 = jax.random.normal(keys[1], (B, D2), dtype=jnp.float32)

    def init_linear(kw, kb, fan_in, fan_out):
        scale = 1.0 / jnp.sqrt(fan_in)
        w = jax.random.uniform(kw, (fan_in, fan_out), jnp.float32, -scale, scale)
        b = jax.random.uniform(kb, (1, fan_out), jnp.float32, -scale, scale)
        return w, b

    # Encoder 1
    w1a, b1a = init_linear(keys[2], keys[3], D1, H_ENC)
    w1b, b1b = init_linear(keys[4], keys[5], H_ENC, OUT_ENC)
    # Encoder 2
    w2a, b2a = init_linear(keys[6], keys[7], D2, H_ENC)
    w2b, b2b = init_linear(keys[8], keys[9], H_ENC, OUT_ENC)
    # Head (fused dim = 2 * OUT_ENC)
    wha, bha = init_linear(keys[10], keys[11], 2 * OUT_ENC, H_HEAD)
    whb, bhb = init_linear(keys[12], keys[13], H_HEAD, N_CLS)

    params = (w1a, b1a, w1b, b1b, w2a, b2a, w2b, b2b, wha, bha, whb, bhb)

    outs, head = mmdl_forward(x1, x2, params)
    jax.block_until_ready(head)

    ref_outs, ref_head = _ref_forward(x1, x2, params)
    assert jnp.allclose(outs[0], ref_outs[0], atol=2e-5), "encoder-1 mismatch"
    assert jnp.allclose(outs[1], ref_outs[1], atol=2e-5), "encoder-2 mismatch"
    assert jnp.allclose(head, ref_head, atol=2e-5), "head mismatch"

    print("KERNEL_OK")
</pallas_src>

<mosaic_0001>
module attributes {stable_mosaic.version = 11 : i64} {
  func.func @mmdl_kernel(%arg0: memref<8x128xf32, #tpu.memory_space<vmem>>, %arg1: memref<4x128x128xf32, #tpu.memory_space<vmem>>, %arg2: memref<4x128xf32, #tpu.memory_space<vmem>>, %arg3: memref<2x8x128xf32, #tpu.memory_space<vmem>>) attributes {dimension_semantics = [], scalar_prefetch = 0 : i64, scratch_operands = 0 : i64, tpu.core_type = #tpu.core_type<tc>} {
    %c0 = arith.constant 0 : index
    %c0_0 = arith.constant 0 : index
    %0 = vector.load %arg0[%c0, %c0_0] : memref<8x128xf32, #tpu.memory_space<vmem>>, vector<8x128xf32>
    %c0_1 = arith.constant 0 : index
    %c0_2 = arith.constant 0 : index
    %c0_3 = arith.constant 0 : index
    %1 = vector.load %arg1[%c0_1, %c0_2, %c0_3] : memref<4x128x128xf32, #tpu.memory_space<vmem>>, vector<1x128x128xf32>
    %2 = vector.shape_cast %1 : vector<1x128x128xf32> to vector<128x128xf32>
    %cst = arith.constant dense<0.000000e+00> : vector<8x128xf32>
    %3 = tpu.matmul %0, %2, %cst {dimension_numbers = #tpu.dot_dimension_numbers<[1], [0], [0], [1], [0, 0, 1, 1], [], []>} : vector<8x128xf32>, vector<128x128xf32>, vector<8x128xf32> -> vector<8x128xf32>
    %c0_4 = arith.constant 0 : index
    %c0_5 = arith.constant 0 : index
    %4 = vector.load %arg2[%c0_4, %c0_5] : memref<4x128xf32, #tpu.memory_space<vmem>>, vector<1x128xf32>
    %5 = vector.broadcast %4 : vector<1x128xf32> to vector<8x128xf32>
    %6 = arith.addf %3, %5 : vector<8x128xf32>
    %cst_6 = arith.constant 0.000000e+00 : f32
    %7 = vector.broadcast %cst_6 : f32 to vector<8x128xf32>
    %8 = arith.maximumf %6, %7 : vector<8x128xf32>
    %c1 = arith.constant 1 : index
    %c0_7 = arith.constant 0 : index
    %c0_8 = arith.constant 0 : index
    %9 = vector.load %arg1[%c1, %c0_7, %c0_8] : memref<4x128x128xf32, #tpu.memory_space<vmem>>, vector<1x128x128xf32>
    %10 = vector.shape_cast %9 : vector<1x128x128xf32> to vector<128x128xf32>
    %cst_9 = arith.constant dense<0.000000e+00> : vector<8x128xf32>
    %11 = tpu.matmul %8, %10, %cst_9 {dimension_numbers = #tpu.dot_dimension_numbers<[1], [0], [0], [1], [0, 0, 1, 1], [], []>} : vector<8x128xf32>, vector<128x128xf32>, vector<8x128xf32> -> vector<8x128xf32>
    %c1_10 = arith.constant 1 : index
    %c0_11 = arith.constant 0 : index
    %12 = vector.load %arg2[%c1_10, %c0_11] : memref<4x128xf32, #tpu.memory_space<vmem>>, vector<1x128xf32>
    %13 = vector.broadcast %12 : vector<1x128xf32> to vector<8x128xf32>
    %14 = arith.addf %11, %13 : vector<8x128xf32>
    %c0_12 = arith.constant 0 : index
    %c0_13 = arith.constant 0 : index
    %c0_14 = arith.constant 0 : index
    %15 = vector.load %arg3[%c0_12, %c0_13, %c0_14] : memref<2x8x128xf32, #tpu.memory_space<vmem>>, vector<1x8x128xf32>
    %16 = vector.shape_cast %15 : vector<1x8x128xf32> to vector<8x128xf32>
    %17 = vector.shape_cast %14 : vector<8x128xf32> to vector<1x8x128xf32>
    tpu.vector_store %arg3[%c0_12, %c0_13, %c0_14], %17 {strides = array<i32>} : memref<2x8x128xf32, #tpu.memory_space<vmem>>, vector<1x8x128xf32>,
    %c2 = arith.constant 2 : index
    %c0_15 = arith.constant 0 : index
    %c0_16 = arith.constant 0 : index
    %18 = vector.load %arg1[%c2, %c0_15, %c0_16] : memref<4x128x128xf32, #tpu.memory_space<vmem>>, vector<1x128x128xf32>
    %19 = vector.shape_cast %18 : vector<1x128x128xf32> to vector<128x128xf32>
    %cst_17 = arith.constant dense<0.000000e+00> : vector<8x128xf32>
    %20 = tpu.matmul %14, %19, %cst_17 {dimension_numbers = #tpu.dot_dimension_numbers<[1], [0], [0], [1], [0, 0, 1, 1], [], []>} : vector<8x128xf32>, vector<128x128xf32>, vector<8x128xf32> -> vector<8x128xf32>
    %c2_18 = arith.constant 2 : index
    %c0_19 = arith.constant 0 : index
    %21 = vector.load %arg2[%c2_18, %c0_19] : memref<4x128xf32, #tpu.memory_space<vmem>>, vector<1x128xf32>
    %22 = vector.broadcast %21 : vector<1x128xf32> to vector<8x128xf32>
    %23 = arith.addf %20, %22 : vector<8x128xf32>
    %cst_20 = arith.constant 0.000000e+00 : f32
    %24 = vector.broadcast %cst_20 : f32 to vector<8x128xf32>
    %25 = arith.maximumf %23, %24 : vector<8x128xf32>
    %c3 = arith.constant 3 : index
    %c0_21 = arith.constant 0 : index
    %c0_22 = arith.constant 0 : index
    %26 = vector.load %arg1[%c3, %c0_21, %c0_22] : memref<4x128x128xf32, #tpu.memory_space<vmem>>, vector<1x128x128xf32>
    %27 = vector.shape_cast %26 : vector<1x128x128xf32> to vector<128x128xf32>
    %cst_23 = arith.constant dense<0.000000e+00> : vector<8x128xf32>
    %28 = tpu.matmul %25, %27, %cst_23 {dimension_numbers = #tpu.dot_dimension_numbers<[1], [0], [0], [1], [0, 0, 1, 1], [], []>} : vector<8x128xf32>, vector<128x128xf32>, vector<8x128xf32> -> vector<8x128xf32>
    %c3_24 = arith.constant 3 : index
    %c0_25 = arith.constant 0 : index
    %29 = vector.load %arg2[%c3_24, %c0_25] : memref<4x128xf32, #tpu.memory_space<vmem>>, vector<1x128xf32>
    %30 = vector.broadcast %29 : vector<1x128xf32> to vector<8x128xf32>
    %31 = arith.addf %28, %30 : vector<8x128xf32>
    %c1_26 = arith.constant 1 : index
    %c0_27 = arith.constant 0 : index
    %c0_28 = arith.constant 0 : index
    %32 = vector.load %arg3[%c1_26, %c0_27, %c0_28] : memref<2x8x128xf32, #tpu.memory_space<vmem>>, vector<1x8x128xf32>
    %33 = vector.shape_cast %32 : vector<1x8x128xf32> to vector<8x128xf32>
    %34 = vector.shape_cast %31 : vector<8x128xf32> to vector<1x8x128xf32>
    tpu.vector_store %arg3[%c1_26, %c0_27, %c0_28], %34 {strides = array<i32>} : memref<2x8x128xf32, #tpu.memory_space<vmem>>, vector<1x8x128xf32>,
    return
  }
}

</mosaic_0001>

<llo_original>
// kernel: mmdl_forward.1
$region0: #{mmdl_forward.1}
  #allocation0 [shape = 'u32[]', space=smem, size = 0x4, offset = 0x4, fixed_abs, tag = 'smem constant byte address 0x4 - core index']
  #allocation1 [shape = 'u32[72,128]{1,0:T(1,128)}', space=vmem, size = 0x9000, scoped, tag = 'internal scratch']
  %s0 = inlined_call_operand.vmem [shape: f32[8,128], index: 0, kind: input, shape index: {}]
  %s1 = inlined_call_operand.vmem [shape: f32[4,128,128], index: 1, kind: input, shape index: {}]
  %s2 = inlined_call_operand.vmem [shape: f32[4,128], index: 2, kind: input, shape index: {}]
  %s3 = inlined_call_operand.vmem [shape: f32[2,8,128], index: 3, kind: output, shape index: {}]
  %s4 = sld [smem:[#allocation0]]
  $region22: #{mmdl_forward.1} parent=0
    _
  %s6 = ssub.s32 1, %s4
  %s7 = scalar_select 0, %s6, %s4
  // Predicated region
  $region2: #{mmdl_forward.1} parent=0 // pred_check
    _
  $region3: #{mmdl_forward.1} parent=0 // pred_check_branch
    %9 = sbr.rel (0) target = $region5
  $region4: #{mmdl_forward.1} parent=0 // pred_region
    _
  $region5: #{mmdl_forward.1} parent=0 // pred_fallthru
    _
  // Predicated region
  $region6: #{mmdl_forward.1} parent=0 // pred_check
    _
  $region7: #{mmdl_forward.1} parent=0 // pred_check_branch
    %11 = sbr.rel (0) target = $region9
  $region8: #{mmdl_forward.1} parent=0 // pred_region
    _
  $region9: #{mmdl_forward.1} parent=0 // pred_fallthru
    _
  // Predicated region
  $region10: #{mmdl_forward.1} parent=0 // pred_check
    _
  $region11: #{mmdl_forward.1} parent=0 // pred_check_branch
    %13 = sbr.rel (0) target = $region13
  $region12: #{mmdl_forward.1} parent=0 // pred_region
    _
  $region13: #{mmdl_forward.1} parent=0 // pred_fallthru
    _
  %v14 = vld [vmem:[%s0] sm:$0xff]
  %v15 = vld [vmem:[%s1] sm:$0xff]
  %v16 = vld [vmem:[%s1 + $0x8] sm:$0xff]
  %v17 = vld [vmem:[%s1 + $0x10] sm:$0xff]
  %v18 = vld [vmem:[%s1 + $0x18] sm:$0xff]
  %v19 = vld [vmem:[%s1 + $0x20] sm:$0xff]
  %v20 = vld [vmem:[%s1 + $0x28] sm:$0xff]
  %v21 = vld [vmem:[%s1 + $0x30] sm:$0xff]
  %v22 = vld [vmem:[%s1 + $0x38] sm:$0xff]
  %v23 = vld [vmem:[%s1 + $0x40] sm:$0xff]
  %v24 = vld [vmem:[%s1 + $0x48] sm:$0xff]
  %v25 = vld [vmem:[%s1 + $0x50] sm:$0xff]
  %v26 = vld [vmem:[%s1 + $0x58] sm:$0xff]
  %v27 = vld [vmem:[%s1 + $0x60] sm:$0xff]
  %v28 = vld [vmem:[%s1 + $0x68] sm:$0xff]
  %v29 = vld [vmem:[%s1 + $0x70] sm:$0xff]
  %v30 = vld [vmem:[%s1 + $0x78] sm:$0xff]
  %v31 = vld [vmem:[%s2] sm:$0x1]
  %v32 = vperm.slane %v31, 0
  %33 = vmatpush.msra.mxu0 %v30
  %34 = vmatpush.msra.mxu0 %v29
  %35 = vmatpush.msra.mxu0 %v28
  %36 = vmatpush.msra.mxu0 %v27
  %37 = vmatpush.msra.mxu0 %v26
  %38 = vmatpush.msra.mxu0 %v25
  %39 = vmatpush.msra.mxu0 %v24
  %40 = vmatpush.msra.mxu0 %v23
  %41 = vmatpush.msra.mxu0 %v22
  %42 = vmatpush.msra.mxu0 %v21
  %43 = vmatpush.msra.mxu0 %v20
  %44 = vmatpush.msra.mxu0 %v19
  %45 = vmatpush.msra.mxu0 %v18
  %46 = vmatpush.msra.mxu0 %v17
  %47 = vmatpush.msra.mxu0 %v16
  %48 = vmatpush.msra.mxu0 %v15
  %49 = vmatmul.f32.gmra.mxu0 %v14
  %v50 = vpop.f32.mrf.mxu0
  %v51 = vadd.f32 %v32, %v50
  %52 = vdwg.mxu0
  %v53 = vmax.f32 %v51, 0.0
  %s54 = scalar_lea.vmem %s1, 128
  %v55 = vld [vmem:[%s54] sm:$0xff]
  %v56 = vld [vmem:[%s54 + $0x8] sm:$0xff]
  %v57 = vld [vmem:[%s54 + $0x10] sm:$0xff]
  %v58 = vld [vmem:[%s54 + $0x18] sm:$0xff]
  %v59 = vld [vmem:[%s54 + $0x20] sm:$0xff]
  %v60 = vld [vmem:[%s54 + $0x28] sm:$0xff]
  %v61 = vld [vmem:[%s54 + $0x30] sm:$0xff]
  %v62 = vld [vmem:[%s54 + $0x38] sm:$0xff]
  %v63 = vld [vmem:[%s54 + $0x40] sm:$0xff]
  %v64 = vld [vmem:[%s54 + $0x48] sm:$0xff]
  %v65 = vld [vmem:[%s54 + $0x50] sm:$0xff]
  %v66 = vld [vmem:[%s54 + $0x58] sm:$0xff]
  %v67 = vld [vmem:[%s54 + $0x60] sm:$0xff]
  %v68 = vld [vmem:[%s54 + $0x68] sm:$0xff]
  %v69 = vld [vmem:[%s54 + $0x70] sm:$0xff]
  %v70 = vld [vmem:[%s54 + $0x78] sm:$0xff]
  %v71 = vld [vmem:[%s2 + $0x1] sm:$0x1]
  %v72 = vperm.slane %v71, 0
  %73 = vmatpush.msra.mxu0 %v70
  %74 = vmatpush.msra.mxu0 %v69
  %75 = vmatpush.msra.mxu0 %v68
  %76 = vmatpush.msra.mxu0 %v67
  %77 = vmatpush.msra.mxu0 %v66
  %78 = vmatpush.msra.mxu0 %v65
  %79 = vmatpush.msra.mxu0 %v64
  %80 = vmatpush.msra.mxu0 %v63
  %81 = vmatpush.msra.mxu0 %v62
  %82 = vmatpush.msra.mxu0 %v61
  %83 = vmatpush.msra.mxu0 %v60
  %84 = vmatpush.msra.mxu0 %v59
  %85 = vmatpush.msra.mxu0 %v58
  %86 = vmatpush.msra.mxu0 %v57
  %87 = vmatpush.msra.mxu0 %v56
  %88 = vmatpush.msra.mxu0 %v55
  %89 = vmatmul.f32.gmra.mxu0 %v53
  %v90 = vpop.f32.mrf.mxu0
  %v91 = vadd.f32 %v72, %v90
  %92 = vdwg.mxu0
  %93 = vst [vmem:[%s3] sm:$0xff] %v91
  %s94 = scalar_lea.vmem %s1, 256
  %v95 = vld [vmem:[%s94] sm:$0xff]
  %v96 = vld [vmem:[%s94 + $0x8] sm:$0xff]
  %v97 = vld [vmem:[%s94 + $0x10] sm:$0xff]
  %v98 = vld [vmem:[%s94 + $0x18] sm:$0xff]
  %v99 = vld [vmem:[%s94 + $0x20] sm:$0xff]
  %v100 = vld [vmem:[%s94 + $0x28] sm:$0xff]
  %v101 = vld [vmem:[%s94 + $0x30] sm:$0xff]
  %v102 = vld [vmem:[%s94 + $0x38] sm:$0xff]
  %v103 = vld [vmem:[%s94 + $0x40] sm:$0xff]
  %v104 = vld [vmem:[%s94 + $0x48] sm:$0xff]
  %v105 = vld [vmem:[%s94 + $0x50] sm:$0xff]
  %v106 = vld [vmem:[%s94 + $0x58] sm:$0xff]
  %v107 = vld [vmem:[%s94 + $0x60] sm:$0xff]
  %v108 = vld [vmem:[%s94 + $0x68] sm:$0xff]
  %v109 = vld [vmem:[%s94 + $0x70] sm:$0xff]
  %v110 = vld [vmem:[%s94 + $0x78] sm:$0xff]
  %v111 = vld [vmem:[%s2 + $0x2] sm:$0x1]
  %v112 = vperm.slane %v111, 0
  %113 = vmatpush.msra.mxu0 %v110
  %114 = vmatpush.msra.mxu0 %v109
  %115 = vmatpush.msra.mxu0 %v108
  %116 = vmatpush.msra.mxu0 %v107
  %117 = vmatpush.msra.mxu0 %v106
  %118 = vmatpush.msra.mxu0 %v105
  %119 = vmatpush.msra.mxu0 %v104
  %120 = vmatpush.msra.mxu0 %v103
  %121 = vmatpush.msra.mxu0 %v102
  %122 = vmatpush.msra.mxu0 %v101
  %123 = vmatpush.msra.mxu0 %v100
  %124 = vmatpush.msra.mxu0 %v99
  %125 = vmatpush.msra.mxu0 %v98
  %126 = vmatpush.msra.mxu0 %v97
  %127 = vmatpush.msra.mxu0 %v96
  %128 = vmatpush.msra.mxu0 %v95
  %129 = vmatmul.f32.gmra.mxu0 %v91
  %v130 = vpop.f32.mrf.mxu0
  %v131 = vadd.f32 %v112, %v130
  %132 = vdwg.mxu0
  %v133 = vmax.f32 %v131, 0.0
  %s134 = scalar_lea.vmem %s1, 384
  %v135 = vld [vmem:[%s134] sm:$0xff]
  %v136 = vld [vmem:[%s134 + $0x8] sm:$0xff]
  %v137 = vld [vmem:[%s134 + $0x10] sm:$0xff]
  %v138 = vld [vmem:[%s134 + $0x18] sm:$0xff]
  %v139 = vld [vmem:[%s134 + $0x20] sm:$0xff]
  %v140 = vld [vmem:[%s134 + $0x28] sm:$0xff]
  %v141 = vld [vmem:[%s134 + $0x30] sm:$0xff]
  %v142 = vld [vmem:[%s134 + $0x38] sm:$0xff]
  %v143 = vld [vmem:[%s134 + $0x40] sm:$0xff]
  %v144 = vld [vmem:[%s134 + $0x48] sm:$0xff]
  %v145 = vld [vmem:[%s134 + $0x50] sm:$0xff]
  %v146 = vld [vmem:[%s134 + $0x58] sm:$0xff]
  %v147 = vld [vmem:[%s134 + $0x60] sm:$0xff]
  %v148 = vld [vmem:[%s134 + $0x68] sm:$0xff]
  %v149 = vld [vmem:[%s134 + $0x70] sm:$0xff]
  %v150 = vld [vmem:[%s134 + $0x78] sm:$0xff]
  %v151 = vld [vmem:[%s2 + $0x3] sm:$0x1]
  %v152 = vperm.slane %v151, 0
  %153 = vmatpush.msra.mxu0 %v150
  %154 = vmatpush.msra.mxu0 %v149
  %155 = vmatpush.msra.mxu0 %v148
  %156 = vmatpush.msra.mxu0 %v147
  %157 = vmatpush.msra.mxu0 %v146
  %158 = vmatpush.msra.mxu0 %v145
  %159 = vmatpush.msra.mxu0 %v144
  %160 = vmatpush.msra.mxu0 %v143
  %161 = vmatpush.msra.mxu0 %v142
  %162 = vmatpush.msra.mxu0 %v141
  %163 = vmatpush.msra.mxu0 %v140
  %164 = vmatpush.msra.mxu0 %v139
  %165 = vmatpush.msra.mxu0 %v138
  %166 = vmatpush.msra.mxu0 %v137
  %167 = vmatpush.msra.mxu0 %v136
  %168 = vmatpush.msra.mxu0 %v135
  %169 = vmatmul.f32.gmra.mxu0 %v133
  %v170 = vpop.f32.mrf.mxu0
  %v171 = vadd.f32 %v152, %v170
  %172 = vdwg.mxu0
  %s173 = scalar_lea.vmem %s3, 8
  %174 = vst [vmem:[%s173] sm:$0xff] %v171
  // Predicated region
  $region14: #{mmdl_forward.1} parent=0 // pred_check
    _
  $region15: #{mmdl_forward.1} parent=0 // pred_check_branch
    %176 = sbr.rel (0) target = $region17
  $region16: #{mmdl_forward.1} parent=0 // pred_region
    _
  $region17: #{mmdl_forward.1} parent=0 // pred_fallthru
    _
  // Predicated region
  $region18: #{mmdl_forward.1} parent=0 // pred_check
    _
  $region19: #{mmdl_forward.1} parent=0 // pred_check_branch
    %178 = sbr.rel (0) target = $region21
  $region20: #{mmdl_forward.1} parent=0 // pred_region
    _
  $region21: #{mmdl_forward.1} parent=0 // pred_fallthru
    _

</llo_original>
